<compile_context>
chip_gen: v7x
topology: tpu7x:2x2x1
jax: 0.10.0
libtpu: 0.0.40
codegen_flags: <defaults>
</compile_context>

<pallas_src>
import functools

import numpy as np
import jax
import jax.numpy as jnp
from jax import lax
from jax.experimental import pallas as pl
from jax.experimental.pallas import tpu as pltpu


def _conv_block_kernel(x_ref, w_ref, scale_ref, shift_ref, o_ref, *,
                       width, ksize, hw_tile, halo, n_spatial_tiles,
                       relu, split_rows):
    # x_ref:     (Cin, L)        whole zero-padded flat image of this batch element
    # w_ref:     (Cout, K*K*Cin) conv weights (compute dtype, unscaled)
    # scale_ref: (Cout, 1) f32   folded BN scale (applied in epilogue, f32)
    # shift_ref: (Cout, 1) f32   folded BN shift
    # o_ref:     (Cout, hw_tile) lane-dense output tile
    pad = ksize // 2
    c_in = x_ref.shape[0]
    # Window length rounded to a lane multiple so the dynamic window load is a
    # plain aligned block load.
    win = -(-(hw_tile + 2 * halo) // 128) * 128

    if n_spatial_tiles == 1:
        xt = x_ref[...]                                    # (Cin, win), fully static
        base = 0
    else:
        # 128-aligned dynamic window start (hw_tile is a multiple of 128).
        start = pl.multiple_of(pl.program_id(1) * hw_tile, 128)
        xt = x_ref[:, pl.ds(start, win)]                   # (Cin, win)
        base = pl.program_id(1) * hw_tile

    # Global flattened spatial position / image column of every output lane.
    pos = base + lax.broadcasted_iota(jnp.int32, (1, hw_tile), 1)
    col = lax.rem(pos, width)

    # Hoisted column-wrap masks: one per distinct dw, reused across all kh.
    masks = {}
    for dw in range(-pad, pad + 1):
        if dw != 0:
            masks[dw] = (col + dw >= 0) & (col + dw < width)   # (1, hw_tile)

    def tap(kh, kw):
        dh, dw = kh - pad, kw - pad
        s = dh * width + dw                                # flat shift of this tap
        t = xt[:, halo + s: halo + s + hw_tile]            # static slice (Cin, hw_tile)
        if dw != 0:
            t = jnp.where(masks[dw], t, 0)                 # column wrap -> zero
        return t
        # Row out-of-bounds is handled by the zero halo padding in the wrapper.

    if split_rows:
        # Per-kernel-row accumulated dots: contraction depth K*Cin per dot,
        # ~K x less live im2col VMEM than the fused variant.
        acc = jnp.zeros(o_ref.shape, jnp.float32)
        kcin = ksize * c_in
        for kh in range(ksize):
            xk = jnp.concatenate([tap(kh, kw) for kw in range(ksize)], axis=0)
            acc = acc + jnp.dot(w_ref[:, kh * kcin:(kh + 1) * kcin], xk,
                                preferred_element_type=jnp.float32)
    else:
        # Fused im2col: one MXU dot with contraction K*K*Cin (best for tiny Cin).
        xcols = jnp.concatenate([tap(kh, kw) for kh in range(ksize)
                                 for kw in range(ksize)], axis=0)
        acc = jnp.dot(w_ref[...], xcols, preferred_element_type=jnp.float32)

    # BatchNorm (eval) + ReLU epilogue, all in f32.
    y = acc * scale_ref[...] + shift_ref[...]
    if relu:
        y = jnp.maximum(y, 0.0)
    o_ref[...] = y.astype(o_ref.dtype)


def _vmem_estimate(hw, hw_tile, c_in, c_out, k, halo, comp_bytes, out_bytes):
    n_tiles = -(-hw // hw_tile)
    win = -(-(hw_tile + 2 * halo) // 128) * 128
    length = (n_tiles - 1) * hw_tile + win
    return (2 * c_in * length * comp_bytes                 # input (double-buffered)
            + 2 * c_out * k * k * c_in * comp_bytes        # weights
            + 2 * c_out * hw_tile * out_bytes              # output (double-buffered)
            + k * k * c_in * hw_tile * comp_bytes          # im2col / tap temporaries
            + c_out * hw_tile * 4                          # f32 accumulator
            + 4 * c_out * 4)                               # scale + shift


def _pick_hw_tile(hw, c_in, c_out, k, halo, comp_bytes, out_bytes,
                  budget=44 * 2 ** 20):
    """Largest 128-multiple spatial tile whose VMEM footprint fits the budget
    (budget chosen to leave headroom on v7x's 64 MiB VMEM)."""
    hw128 = -(-hw // 128) * 128
    for t in (2048, 1024, 512, 256, 128):
        if t != 128 and (t > hw128 or hw128 % t != 0):
            continue
        if _vmem_estimate(hw, t, c_in, c_out, k, halo, comp_bytes, out_bytes) <= budget:
            return t
    return 128


def conv2d_block(x, weight, *, bn_params=None, relu=False, eps=1e-5,
                 hw_tile=None, compute_dtype=jnp.bfloat16, out_dtype=jnp.float32,
                 split_rows=None):
    """x: (N, Cin, H, W) NCHW (as in PyTorch). weight: (Cout, Cin, K, K) OIHW.
       bn_params: optional (gamma, beta, running_mean, running_var), each (Cout,).
       Returns (N, Cout, H, W) in out_dtype."""
    n, c_in, h, w = x.shape
    c_out, c_in_w, k, k2 = weight.shape
    assert c_in_w == c_in and k == k2
    assert k % 2 == 1, "padding=k//2 gives same-size output only for odd K"
    pad = k // 2
    hw = h * w
    halo = pad * w + pad                         # max |flat shift| over all taps

    comp_bytes = np.dtype(compute_dtype).itemsize
    out_bytes = np.dtype(out_dtype).itemsize

    if hw_tile is None:
        hw_tile = _pick_hw_tile(hw, c_in, c_out, k, halo, comp_bytes, out_bytes)
    assert hw_tile % 128 == 0, "hw_tile must be a multiple of 128 (lane-dense)"
    n_tiles = -(-hw // hw_tile)
    hw_padded = n_tiles * hw_tile
    win = -(-(hw_tile + 2 * halo) // 128) * 128
    length = (n_tiles - 1) * hw_tile + win       # padded flat-spatial length

    if split_rows is None:
        # Fused im2col only for tiny contraction; per-row dots otherwise.
        split_rows = (k * k * c_in) >= 512

    # ---- glue: flatten + single small zero halo pad (no window duplication) ----
    x_flat = x.reshape(n, c_in, hw).astype(compute_dtype)
    x_pad = jnp.pad(x_flat, ((0, 0), (0, 0), (halo, length - hw - halo)))

    # ---- fold BatchNorm (eval) into per-channel scale/shift (applied in f32) ---
    if bn_params is not None:
        gamma, beta, mean, var = bn_params
        scale = gamma.astype(jnp.float32) / jnp.sqrt(var.astype(jnp.float32) + eps)
        shift = beta.astype(jnp.float32) - mean.astype(jnp.float32) * scale
    else:
        scale = jnp.ones((c_out,), jnp.float32)
        shift = jnp.zeros((c_out,), jnp.float32)
    scale = scale.reshape(c_out, 1)
    shift = shift.reshape(c_out, 1)

    # weight (Cout, Cin, K, K) -> (Cout, K, K, Cin) -> (Cout, K*K*Cin), unscaled.
    w2d = jnp.transpose(weight, (0, 2, 3, 1)).reshape(c_out, k * k * c_in)
    w2d = w2d.astype(compute_dtype)

    kernel = functools.partial(_conv_block_kernel, width=w, ksize=k,
                               hw_tile=hw_tile, halo=halo,
                               n_spatial_tiles=n_tiles, relu=relu,
                               split_rows=split_rows)

    vmem_est = _vmem_estimate(hw, hw_tile, c_in, c_out, k, halo,
                              comp_bytes, out_bytes)
    vmem_limit = int(min(64 * 2 ** 20, max(2 * vmem_est, 32 * 2 ** 20)))

    cost = pl.CostEstimate(
        flops=2 * n * hw * c_out * k * k * c_in,
        transcendentals=0,
        bytes_accessed=(n * c_in * hw * comp_bytes
                        + c_out * k * k * c_in * comp_bytes
                        + n * c_out * hw * out_bytes))

    out = pl.pallas_call(
        kernel,
        out_shape=jax.ShapeDtypeStruct((n, c_out, hw_padded), out_dtype),
        grid_spec=pl.GridSpec(
            grid=(n, n_tiles),
            in_specs=[
                # Whole padded image of batch b; block index constant in j, so
                # it is DMA'd into VMEM once per batch element (no re-fetch).
                pl.BlockSpec((pl.Squeezed(), c_in, length), lambda b, j: (b, 0, 0)),
                pl.BlockSpec((c_out, k * k * c_in), lambda b, j: (0, 0)),
                pl.BlockSpec((c_out, 1), lambda b, j: (0, 0)),
                pl.BlockSpec((c_out, 1), lambda b, j: (0, 0)),
            ],
            out_specs=pl.BlockSpec((pl.Squeezed(), c_out, hw_tile),
                                   lambda b, j: (b, 0, j)),
        ),
        compiler_params=pltpu.CompilerParams(
            dimension_semantics=("parallel", "parallel"),
            vmem_limit_bytes=vmem_limit),
        cost_estimate=cost,
    )(x_pad, w2d, scale, shift)

    if hw_padded != hw:
        out = out[:, :, :hw]                     # strip remainder lanes
    return out.reshape(n, c_out, h, w)           # channel-major: pure reshape


if __name__ == "__main__":
    # Shapes consistent with the module: filters_in=4, filters_out=8,
    # kernel_size=3, bn=True, relu=True; input NCHW (2, 4, 16, 16).
    N, C_IN, C_OUT, H, W, K = 2, 4, 8, 16, 16, 3
    EPS = 1e-5

    key = jax.random.PRNGKey(0)
    kx, kw_, km = jax.random.split(key, 3)

    x = jax.random.normal(kx, (N, C_IN, H, W), dtype=jnp.float32)
    weight = 0.2 * jax.random.normal(kw_, (C_OUT, C_IN, K, K), dtype=jnp.float32)

    gamma = 1.0 + 0.1 * jnp.arange(C_OUT, dtype=jnp.float32)
    beta = 0.05 * jnp.arange(C_OUT, dtype=jnp.float32)
    running_mean = 0.1 * jax.random.normal(km, (C_OUT,), dtype=jnp.float32)
    running_var = 0.5 + 0.5 * jnp.abs(
        jnp.sin(jnp.arange(C_OUT, dtype=jnp.float32) + 1.0))
    bn = (gamma, beta, running_mean, running_var)

    # Reference (plain XLA). Module order: conv -> BN(eval) -> ReLU.
    scale_ref = gamma / jnp.sqrt(running_var + EPS)
    shift_ref = beta - running_mean * scale_ref
    pad_cfg = ((K // 2, K // 2), (K // 2, K // 2))
    conv = lax.conv_general_dilated(x, weight, (1, 1), pad_cfg,
                                    dimension_numbers=("NCHW", "OIHW", "NCHW"))
    ref_module = jnp.maximum(
        conv * scale_ref[None, :, None, None] + shift_ref[None, :, None, None], 0.0)

    # 1) f32 compute, auto tiling (single 256-lane tile), fused im2col path.
    out_f32 = jax.block_until_ready(conv2d_block(
        x, weight, bn_params=bn, relu=True, eps=EPS, compute_dtype=jnp.float32))
    assert out_f32.shape == (N, C_OUT, H, W)
    err = float(jnp.max(jnp.abs(out_f32 - ref_module)))
    assert jnp.allclose(out_f32, ref_module, atol=2e-3, rtol=2e-3), f"f32 err {err}"

    # 2) f32 compute, per-row accumulated-dots contraction path.
    out_rows = jax.block_until_ready(conv2d_block(
        x, weight, bn_params=bn, relu=True, eps=EPS, compute_dtype=jnp.float32,
        split_rows=True))
    err = float(jnp.max(jnp.abs(out_rows - ref_module)))
    assert jnp.allclose(out_rows, ref_module, atol=2e-3, rtol=2e-3), f"rows err {err}"

    # 3) bf16 compute + bf16 output, two 128-lane spatial tiles (exercises the
    #    multi-tile grid and the dynamic 128-aligned window slice).
    out_bf16 = jax.block_until_ready(conv2d_block(
        x, weight, bn_params=bn, relu=True, eps=EPS, compute_dtype=jnp.bfloat16,
        out_dtype=jnp.bfloat16, hw_tile=128))
    assert out_bf16.shape == (N, C_OUT, H, W)
    out_bf16_f = out_bf16.astype(jnp.float32)
    err = float(jnp.max(jnp.abs(out_bf16_f - ref_module)))
    assert jnp.allclose(out_bf16_f, ref_module, atol=1.5e-1, rtol=1.5e-1), \
        f"bf16 err {err}"

    # 4) tic-tac-toe-sized board (3x3 -> hw=9, not a multiple of 128): exercises
    #    the padded-remainder path; conv only (bn=False, relu=False).
    x3 = jax.random.normal(jax.random.PRNGKey(1), (2, 2, 3, 3), dtype=jnp.float32)
    w3 = 0.3 * jax.random.normal(jax.random.PRNGKey(2), (4, 2, 3, 3),
                                 dtype=jnp.float32)
    ref3 = lax.conv_general_dilated(x3, w3, (1, 1), ((1, 1), (1, 1)),
                                    dimension_numbers=("NCHW", "OIHW", "NCHW"))
    out3 = jax.block_until_ready(conv2d_block(x3, w3, compute_dtype=jnp.float32))
    err = float(jnp.max(jnp.abs(out3 - ref3)))
    assert jnp.allclose(out3, ref3, atol=2e-3, rtol=2e-3), f"3x3 err {err}"

    print("KERNEL_OK")
</pallas_src>

<mosaic_0001>
module attributes {stable_mosaic.version = 11 : i64} {
  func.func @_conv_block_kernel(%arg0: i32, %arg1: i32, %arg2: memref<1x4x384xf32, #tpu.memory_space<vmem>>, %arg3: memref<8x36xf32, #tpu.memory_space<vmem>>, %arg4: memref<8x1xf32, #tpu.memory_space<vmem>>, %arg5: memref<8x1xf32, #tpu.memory_space<vmem>>, %arg6: memref<1x8x256xf32, #tpu.memory_space<vmem>>) attributes {dimension_semantics = [#tpu.dimension_semantics<parallel>, #tpu.dimension_semantics<parallel>], iteration_bounds = array<i64: 2, 1>, scalar_prefetch = 0 : i64, scratch_operands = 0 : i64, tpu.core_type = #tpu.core_type<tc>, window_params = [{transform_indices = @transform_0, window_bounds = array<i64: 1, 4, 384>}, {pipeline_mode = #tpu.pipeline_mode<synchronous>, transform_indices = @transform_1, window_bounds = array<i64: 8, 36>}, {pipeline_mode = #tpu.pipeline_mode<synchronous>, transform_indices = @transform_2, window_bounds = array<i64: 8, 1>}, {pipeline_mode = #tpu.pipeline_mode<synchronous>, transform_indices = @transform_3, window_bounds = array<i64: 8, 1>}, {transform_indices = @transform_4, window_bounds = array<i64: 1, 8, 256>}]} {
    %c0 = arith.constant 0 : index
    %c0_0 = arith.constant 0 : index
    %c0_1 = arith.constant 0 : index
    %0 = vector.load %arg2[%c0, %c0_0, %c0_1] : memref<1x4x384xf32, #tpu.memory_space<vmem>>, vector<1x4x384xf32>
    %1 = vector.shape_cast %0 : vector<1x4x384xf32> to vector<4x384xf32>
    %2 = tpu.iota {dimensions = array<i32: 1>} : vector<1x256xi32>
    %c0_i32 = arith.constant 0 : i32
    %3 = vector.broadcast %c0_i32 : i32 to vector<1x256xi32>
    %4 = arith.addi %3, %2 : vector<1x256xi32>
    %c16_i32 = arith.constant 16 : i32
    %5 = vector.broadcast %c16_i32 : i32 to vector<1x256xi32>
    %6 = arith.remsi %4, %5 : vector<1x256xi32>
    %c-1_i32 = arith.constant -1 : i32
    %7 = vector.broadcast %c-1_i32 : i32 to vector<1x256xi32>
    %8 = arith.addi %6, %7 : vector<1x256xi32>
    %c0_i32_2 = arith.constant 0 : i32
    %9 = vector.broadcast %c0_i32_2 : i32 to vector<1x256xi32>
    %10 = arith.cmpi sge, %8, %9 : vector<1x256xi32>
    %c-1_i32_3 = arith.constant -1 : i32
    %11 = vector.broadcast %c-1_i32_3 : i32 to vector<1x256xi32>
    %12 = arith.addi %6, %11 : vector<1x256xi32>
    %c16_i32_4 = arith.constant 16 : i32
    %13 = vector.broadcast %c16_i32_4 : i32 to vector<1x256xi32>
    %14 = arith.cmpi slt, %12, %13 : vector<1x256xi32>
    %15 = arith.andi %10, %14 : vector<1x256xi1>
    %c1_i32 = arith.constant 1 : i32
    %16 = vector.broadcast %c1_i32 : i32 to vector<1x256xi32>
    %17 = arith.addi %6, %16 : vector<1x256xi32>
    %c0_i32_5 = arith.constant 0 : i32
    %18 = vector.broadcast %c0_i32_5 : i32 to vector<1x256xi32>
    %19 = arith.cmpi sge, %17, %18 : vector<1x256xi32>
    %c1_i32_6 = arith.constant 1 : i32
    %20 = vector.broadcast %c1_i32_6 : i32 to vector<1x256xi32>
    %21 = arith.addi %6, %20 : vector<1x256xi32>
    %c16_i32_7 = arith.constant 16 : i32
    %22 = vector.broadcast %c16_i32_7 : i32 to vector<1x256xi32>
    %23 = arith.cmpi slt, %21, %22 : vector<1x256xi32>
    %24 = arith.andi %19, %23 : vector<1x256xi1>
    %25 = vector.extract_strided_slice %1 {offsets = [0, 0], sizes = [4, 256], strides = [1, 1]} : vector<4x384xf32> to vector<4x256xf32>
    %c0_i32_8 = arith.constant 0 : i32
    %26 = arith.sitofp %c0_i32_8 : i32 to f32
    %27 = vector.shape_cast %15 : vector<1x256xi1> to vector<1x256xi1>
    %28 = vector.broadcast %27 : vector<1x256xi1> to vector<4x256xi1>
    %29 = vector.broadcast %26 : f32 to vector<4x256xf32>
    %30 = arith.select %28, %25, %29 : vector<4x256xi1>, vector<4x256xf32>
    %31 = vector.extract_strided_slice %1 {offsets = [0, 1], sizes = [4, 256], strides = [1, 1]} : vector<4x384xf32> to vector<4x256xf32>
    %32 = vector.extract_strided_slice %1 {offsets = [0, 2], sizes = [4, 256], strides = [1, 1]} : vector<4x384xf32> to vector<4x256xf32>
    %c0_i32_9 = arith.constant 0 : i32
    %33 = arith.sitofp %c0_i32_9 : i32 to f32
    %34 = vector.shape_cast %24 : vector<1x256xi1> to vector<1x256xi1>
    %35 = vector.broadcast %34 : vector<1x256xi1> to vector<4x256xi1>
    %36 = vector.broadcast %33 : f32 to vector<4x256xf32>
    %37 = arith.select %35, %32, %36 : vector<4x256xi1>, vector<4x256xf32>
    %38 = vector.extract_strided_slice %1 {offsets = [0, 16], sizes = [4, 256], strides = [1, 1]} : vector<4x384xf32> to vector<4x256xf32>
    %c0_i32_10 = arith.constant 0 : i32
    %39 = arith.sitofp %c0_i32_10 : i32 to f32
    %40 = vector.shape_cast %15 : vector<1x256xi1> to vector<1x256xi1>
    %41 = vector.broadcast %40 : vector<1x256xi1> to vector<4x256xi1>
    %42 = vector.broadcast %39 : f32 to vector<4x256xf32>
    %43 = arith.select %41, %38, %42 : vector<4x256xi1>, vector<4x256xf32>
    %44 = vector.extract_strided_slice %1 {offsets = [0, 17], sizes = [4, 256], strides = [1, 1]} : vector<4x384xf32> to vector<4x256xf32>
    %45 = vector.extract_strided_slice %1 {offsets = [0, 18], sizes = [4, 256], strides = [1, 1]} : vector<4x384xf32> to vector<4x256xf32>
    %c0_i32_11 = arith.constant 0 : i32
    %46 = arith.sitofp %c0_i32_11 : i32 to f32
    %47 = vector.shape_cast %24 : vector<1x256xi1> to vector<1x256xi1>
    %48 = vector.broadcast %47 : vector<1x256xi1> to vector<4x256xi1>
    %49 = vector.broadcast %46 : f32 to vector<4x256xf32>
    %50 = arith.select %48, %45, %49 : vector<4x256xi1>, vector<4x256xf32>
    %51 = vector.extract_strided_slice %1 {offsets = [0, 32], sizes = [4, 256], strides = [1, 1]} : vector<4x384xf32> to vector<4x256xf32>
    %c0_i32_12 = arith.constant 0 : i32
    %52 = arith.sitofp %c0_i32_12 : i32 to f32
    %53 = vector.shape_cast %15 : vector<1x256xi1> to vector<1x256xi1>
    %54 = vector.broadcast %53 : vector<1x256xi1> to vector<4x256xi1>
    %55 = vector.broadcast %52 : f32 to vector<4x256xf32>
    %56 = arith.select %54, %51, %55 : vector<4x256xi1>, vector<4x256xf32>
    %57 = vector.extract_strided_slice %1 {offsets = [0, 33], sizes = [4, 256], strides = [1, 1]} : vector<4x384xf32> to vector<4x256xf32>
    %58 = vector.extract_strided_slice %1 {offsets = [0, 34], sizes = [4, 256], strides = [1, 1]} : vector<4x384xf32> to vector<4x256xf32>
    %c0_i32_13 = arith.constant 0 : i32
    %59 = arith.sitofp %c0_i32_13 : i32 to f32
    %60 = vector.shape_cast %24 : vector<1x256xi1> to vector<1x256xi1>
    %61 = vector.broadcast %60 : vector<1x256xi1> to vector<4x256xi1>
    %62 = vector.broadcast %59 : f32 to vector<4x256xf32>
    %63 = arith.select %61, %58, %62 : vector<4x256xi1>, vector<4x256xf32>
    %64 = tpu.concatenate %30, %31, %37, %43, %44, %50, %56, %57, %63 in 0 : vector<4x256xf32>, vector<4x256xf32>, vector<4x256xf32>, vector<4x256xf32>, vector<4x256xf32>, vector<4x256xf32>, vector<4x256xf32>, vector<4x256xf32>, vector<4x256xf32> -> vector<36x256xf32>
    %c0_14 = arith.constant 0 : index
    %c0_15 = arith.constant 0 : index
    %65 = vector.load %arg3[%c0_14, %c0_15] : memref<8x36xf32, #tpu.memory_space<vmem>>, vector<8x36xf32>
    %cst = arith.constant dense<0.000000e+00> : vector<8x256xf32>
    %66 = tpu.matmul %65, %64, %cst {dimension_numbers = #tpu.dot_dimension_numbers<[1], [0], [0], [1], [0, 0, 1, 1], [], []>} : vector<8x36xf32>, vector<36x256xf32>, vector<8x256xf32> -> vector<8x256xf32>
    %c0_16 = arith.constant 0 : index
    %c0_17 = arith.constant 0 : index
    %67 = vector.load %arg4[%c0_16, %c0_17] : memref<8x1xf32, #tpu.memory_space<vmem>>, vector<8x1xf32>
    %68 = vector.broadcast %67 : vector<8x1xf32> to vector<8x256xf32>
    %69 = arith.mulf %66, %68 : vector<8x256xf32>
    %c0_18 = arith.constant 0 : index
    %c0_19 = arith.constant 0 : index
    %70 = vector.load %arg5[%c0_18, %c0_19] : memref<8x1xf32, #tpu.memory_space<vmem>>, vector<8x1xf32>
    %71 = vector.broadcast %70 : vector<8x1xf32> to vector<8x256xf32>
    %72 = arith.addf %69, %71 : vector<8x256xf32>
    %cst_20 = arith.constant 0.000000e+00 : f32
    %73 = vector.broadcast %cst_20 : f32 to vector<8x256xf32>
    %74 = arith.maximumf %72, %73 : vector<8x256xf32>
    %c0_21 = arith.constant 0 : index
    %c0_22 = arith.constant 0 : index
    %c0_23 = arith.constant 0 : index
    %75 = vector.load %arg6[%c0_21, %c0_22, %c0_23] : memref<1x8x256xf32, #tpu.memory_space<vmem>>, vector<1x8x256xf32>
    %76 = vector.shape_cast %75 : vector<1x8x256xf32> to vector<8x256xf32>
    %77 = vector.shape_cast %74 : vector<8x256xf32> to vector<1x8x256xf32>
    tpu.vector_store %arg6[%c0_21, %c0_22, %c0_23], %77 {strides = array<i32>} : memref<1x8x256xf32, #tpu.memory_space<vmem>>, vector<1x8x256xf32>,
    return
  }
  func.func @transform_0(%arg0: i32, %arg1: i32) -> (i32, i32, i32) {
    %c0_i32 = arith.constant 0 : i32
    %c0_i32_0 = arith.constant 0 : i32
    %c0_i32_1 = arith.constant 0 : i32
    return %arg0, %c0_i32, %c0_i32_0 : i32, i32, i32
  }
  func.func @transform_1(%arg0: i32, %arg1: i32) -> (i32, i32) {
    %c0_i32 = arith.constant 0 : i32
    %c0_i32_0 = arith.constant 0 : i32
    %c0_i32_1 = arith.constant 0 : i32
    return %c0_i32, %c0_i32_0 : i32, i32
  }
  func.func @transform_2(%arg0: i32, %arg1: i32) -> (i32, i32) {
    %c0_i32 = arith.constant 0 : i32
    %c0_i32_0 = arith.constant 0 : i32
    %c0_i32_1 = arith.constant 0 : i32
    return %c0_i32, %c0_i32_0 : i32, i32
  }
  func.func @transform_3(%arg0: i32, %arg1: i32) -> (i32, i32) {
    %c0_i32 = arith.constant 0 : i32
    %c0_i32_0 = arith.constant 0 : i32
    %c0_i32_1 = arith.constant 0 : i32
    return %c0_i32, %c0_i32_0 : i32, i32
  }
  func.func @transform_4(%arg0: i32, %arg1: i32) -> (i32, i32, i32) {
    %c0_i32 = arith.constant 0 : i32
    %c0_i32_0 = arith.constant 0 : i32
    return %arg0, %c0_i32, %arg1 : i32, i32, i32
  }
}

</mosaic_0001>

<llo_original>
// kernel: tpu_custom_call.1
$region0: #{tpu_custom_call.1}
  #allocation0 [shape = 'u32[]', space=smem, size = 0x4, offset = 0x4, fixed_abs, tag = 'smem constant byte address 0x4 - core index']
  #allocation1 [shape = 'u32[144,128]{1,0:T(1,128)}', space=vmem, size = 0x12000, scoped, tag = 'internal scratch']
  %s0 = inlined_call_operand.hbm [shape: f32[2,4,384], index: 0, kind: input, shape index: {}]
  %s1 = inlined_call_operand.vmem [shape: f32[8,36], index: 1, kind: input, shape index: {}]
  %s2 = inlined_call_operand.vmem [shape: f32[8,1], index: 2, kind: input, shape index: {}]
  %s3 = inlined_call_operand.vmem [shape: f32[8,1], index: 3, kind: input, shape index: {}]
  %s4 = inlined_call_operand.hbm [shape: f32[2,8,256], index: 4, kind: output, shape index: {}]
  %s5 = sld [smem:[#allocation0]]
  $region53: #{tpu_custom_call.1} parent=0
    _
  %s7 = ssub.s32 1, %s5
  %s8 = scalar_select 0, %s7, %s5
  $region1: #{tpu_custom_call.1} parent=0
    #allocation2 [shape = 'u8[12288]{0}', space=vmem, size = 0x3000, scoped, tag = 'input window, operand 0']
    #allocation3 [shape = 's32[2]{0}', space=sflag, size = 0x8, scoped, tag = 'scoped memory for tpu_custom_call.1']
    #allocation4 [shape = 's32[2]{0}', space=sflag, size = 0x8, scoped, tag = 'scoped memory for tpu_custom_call.1']
    #allocation5 [shape = 'u8[16384]{0}', space=vmem, size = 0x4000, scoped, tag = 'output window, operand 0']
    %9 = vsyncpa [#allocation3], 0
    %s10 = scalar_lea.sflag [#allocation3], 1
    %11 = vsyncpa %s10, 0
    %12 = vsyncpa [#allocation4], 0
    %s13 = scalar_lea.sflag [#allocation4], 1
    %14 = vsyncpa %s13, 0
    loop: start=0, step=1, limit=4
    $region2: #{tpu_custom_call.1} parent=1 // loop_pre_header
      _
    $region3: #{tpu_custom_call.1} parent=1 // loop_header
      %s16 = sphi 0, %s20
      %p17 = scmp.ge.s32.totalorder %s16, 4
      %s23 = sphi 0, %s35
      %s24 = sphi 0, %s31
      %s25 = sphi 0, %s23
      %s26 = sphi 0, %s24
      %s27 = sphi 0, %s25
      %s28 = sphi 0, %s26
      %s38 = sphi 0, %s40
      %s41 = sphi 0, %s38
      %s42 = sphi 0, %s41
      %s58 = sphi 0, %s42
      %s62 = sphi 0, %s62
      %s64 = sphi 0, %s62
      %s65 = sphi 0, %s64
      %s79 = sphi 0, %s65
      %s83 = sphi 0, %s83
      %s85 = sphi 0, %s83
      %s86 = sphi 0, %s85
      %s100 = sphi 0, %s86
      %s104 = sphi 0, %s104
      %s106 = sphi 0, %s104
      %s107 = sphi 0, %s106
      %s121 = sphi 0, %s107
      %s129 = sphi 0, %s131
      %s132 = sphi 0, %s129
      %s133 = sphi 0, %s132
      %s149 = sphi 0, %s133
    $region4: #{tpu_custom_call.1} parent=1 // loop_header_branch
      %19 = sbr.rel (%p17) target = $region8
    $region5: #{tpu_custom_call.1} parent=1 // loop_body
      %s21 = ssub.s32 %s16, 1
      %s22 = ssub.s32 %s16, 2
      %s29 = sadd.s32 1, %s24
      %p30 = scmp.ge.s32.totalorder %s29, 1
      %s31 = scalar_select %p30, 0, %s29
      %s32 = sadd.s32 1, %s23
      %s33 = scalar_select %p30, %s32, %s23
      %p34 = scmp.ge.s32.totalorder %s33, 2
      %s35 = scalar_select %p34, 0, %s33
      %s36 = ssub.s32 %s23, %s35
      %p37 = scmp.eq.s32.totalorder %s36, 0
      %s39 = sadd.s32 %s38, 1
      %s40 = scalar_select %p37, %s38, %s39
      %p43 = pneg %p37
      %p44 = scmp.eq.s32.totalorder %s16, 1
      %p45 = por %p43, %p44
      %p46 = scmp.ne.s32.totalorder %s38, %s41
      %p47 = scmp.eq.s32.totalorder %s16, 0
      %p48 = por %p46, %p47
      %p49 = scmp.ne.s32.totalorder %s38, %s41
      %p50 = scmp.eq.s32.totalorder %s21, 1
      %p51 = por %p49, %p50
      %p52 = scmp.ne.s32.totalorder %s41, %s42
      %p53 = scmp.eq.s32.totalorder %s21, 0
      %p54 = por %p52, %p53
      %p55 = scmp.ne.s32.totalorder %s41, %s42
      %p56 = scmp.eq.s32.totalorder %s22, 1
      %p57 = por %p55, %p56
      %p59 = scmp.ne.s32.totalorder %s42, %s58
      %p60 = scmp.eq.s32.totalorder %s22, 0
      %p61 = por %p59, %p60
      %s63 = sadd.s32 %s62, 1
      %p66 = scmp.eq.s32.totalorder %s16, 1
      %p67 = scmp.ne.s32.totalorder %s62, %s64
      %p68 = scmp.eq.s32.totalorder %s16, 0
      %p69 = por %p67, %p68
      %p70 = scmp.ne.s32.totalorder %s62, %s64
      %p71 = scmp.eq.s32.totalorder %s21, 1
      %p72 = por %p70, %p71
      %p73 = scmp.ne.s32.totalorder %s64, %s65
      %p74 = scmp.eq.s32.totalorder %s21, 0
      %p75 = por %p73, %p74
      %p76 = scmp.ne.s32.totalorder %s64, %s65
      %p77 = scmp.eq.s32.totalorder %s22, 1
      %p78 = por %p76, %p77
      %p80 = scmp.ne.s32.totalorder %s65, %s79
      %p81 = scmp.eq.s32.totalorder %s22, 0
      %p82 = por %p80, %p81
      %s84 = sadd.s32 %s83, 1
      %p87 = scmp.eq.s32.totalorder %s16, 1
      %p88 = scmp.ne.s32.totalorder %s83, %s85
      %p89 = scmp.eq.s32.totalorder %s16, 0
      %p90 = por %p88, %p89
      %p91 = scmp.ne.s32.totalorder %s83, %s85
      %p92 = scmp.eq.s32.totalorder %s21, 1
      %p93 = por %p91, %p92
      %p94 = scmp.ne.s32.totalorder %s85, %s86
      %p95 = scmp.eq.s32.totalorder %s21, 0
      %p96 = por %p94, %p95
      %p97 = scmp.ne.s32.totalorder %s85, %s86
      %p98 = scmp.eq.s32.totalorder %s22, 1
      %p99 = por %p97, %p98
      %p101 = scmp.ne.s32.totalorder %s86, %s100
      %p102 = scmp.eq.s32.totalorder %s22, 0
      %p103 = por %p101, %p102
      %s105 = sadd.s32 %s104, 1
      %p108 = scmp.eq.s32.totalorder %s16, 1
      %p109 = scmp.ne.s32.totalorder %s104, %s106
      %p110 = scmp.eq.s32.totalorder %s16, 0
      %p111 = por %p109, %p110
      %p112 = scmp.ne.s32.totalorder %s104, %s106
      %p113 = scmp.eq.s32.totalorder %s21, 1
      %p114 = por %p112, %p113
      %p115 = scmp.ne.s32.totalorder %s106, %s107
      %p116 = scmp.eq.s32.totalorder %s21, 0
      %p117 = por %p115, %p116
      %p118 = scmp.ne.s32.totalorder %s106, %s107
      %p119 = scmp.eq.s32.totalorder %s22, 1
      %p120 = por %p118, %p119
      %p122 = scmp.ne.s32.totalorder %s107, %s121
      %p123 = scmp.eq.s32.totalorder %s22, 0
      %p124 = por %p122, %p123
      %s125 = ssub.s32 %s23, %s35
      %s126 = ssub.s32 %s24, %s31
      %s127 = sor.u32 %s125, %s126
      %p128 = scmp.eq.s32.totalorder %s127, 0
      %s130 = sadd.s32 %s129, 1
      %s131 = scalar_select %p128, %s129, %s130
      %p134 = pneg %p128
      %p135 = scmp.eq.s32.totalorder %s16, 1
      %p136 = por %p134, %p135
      %p137 = scmp.ne.s32.totalorder %s129, %s132
      %p138 = scmp.eq.s32.totalorder %s16, 0
      %p139 = por %p137, %p138
      %p140 = scmp.ne.s32.totalorder %s129, %s132
      %p141 = scmp.eq.s32.totalorder %s21, 1
      %p142 = por %p140, %p141
      %p143 = scmp.ne.s32.totalorder %s132, %s133
      %p144 = scmp.eq.s32.totalorder %s21, 0
      %p145 = por %p143, %p144
      %p146 = scmp.ne.s32.totalorder %s132, %s133
      %p147 = scmp.eq.s32.totalorder %s22, 1
      %p148 = por %p146, %p147
      %p150 = scmp.ne.s32.totalorder %s133, %s149
      %p151 = scmp.eq.s32.totalorder %s22, 0
      %p152 = por %p150, %p151
      %p153 = scmp.le.s32.totalorder 1, %s16
      %p154 = scmp.lt.s32.totalorder %s16, 3
      %p155 = pnand %p153, %p154
      %p156 = pneg %p155
      // Predicated region
      $region9: #{tpu_custom_call.1} parent=5 // pred_check
        _
      $region10: #{tpu_custom_call.1} parent=5 // pred_check_branch
        %158 = sbr.rel (%p155) target = $region12
      $region11: #{tpu_custom_call.1} parent=5 // pred_region
        %s159 = ssub.s32 %s16, 1
        // Predicated region
        $region13: #{tpu_custom_call.1} parent=11 // pred_check
          %p160 = pneg %p75
        $region14: #{tpu_custom_call.1} parent=11 // pred_check_branch
          %162 = sbr.rel (%p160) target = $region16
        $region15: #{tpu_custom_call.1} parent=11 // pred_region
          _
        $region16: #{tpu_custom_call.1} parent=11 // pred_fallthru
          _
        // Predicated region
        $region17: #{tpu_custom_call.1} parent=11 // pred_check
          %p163 = pneg %p96
        $region18: #{tpu_custom_call.1} parent=11 // pred_check_branch
          %165 = sbr.rel (%p163) target = $region20
        $region19: #{tpu_custom_call.1} parent=11 // pred_region
          _
        $region20: #{tpu_custom_call.1} parent=11 // pred_fallthru
          _
        // Predicated region
        $region21: #{tpu_custom_call.1} parent=11 // pred_check
          %p166 = pneg %p117
        $region22: #{tpu_custom_call.1} parent=11 // pred_check_branch
          %168 = sbr.rel (%p166) target = $region24
        $region23: #{tpu_custom_call.1} parent=11 // pred_region
          _
        $region24: #{tpu_custom_call.1} parent=11 // pred_fallthru
          _
      $region12: #{tpu_custom_call.1} parent=5 // pred_fallthru
        _
      %p169 = scmp.lt.s32.totalorder %s16, 2
      // Predicated region
      $region25: #{tpu_custom_call.1} parent=5 // pred_check
        %p170 = pneg %p169
      $region26: #{tpu_custom_call.1} parent=5 // pred_check_branch
        %172 = sbr.rel (%p170) target = $region28
      $region27: #{tpu_custom_call.1} parent=5 // pred_region
        // Predicated region
        $region29: #{tpu_custom_call.1} parent=27 // pred_check
          %p173 = pneg %p48
        $region30: #{tpu_custom_call.1} parent=27 // pred_check_branch
          %175 = sbr.rel (%p173) target = $region32
        $region31: #{tpu_custom_call.1} parent=27 // pred_region
          %s176 = sand.u32 %s38, 1
          %s177 = scalar_lea.sflag [#allocation3], %s176
          %s178 = sand.u32 %s38, 1
          %s179 = smul.addr %s178, 12
          %s180 = scalar_lea.vmem [#allocation2], %s179
          %s182 = ssub.s32 192, 192
          %183 = vsyncadd %s177, %s182
          %s184 = smul.addr %s23, 3
          %s185 = smul.addr %s184, 64
          %s186 = scalar_lea.hbm %s0, %s185
          %s188 = sshll.u32 %s180, 4
          %s189 = int_to_ptr.vmem [resolvable:$true] %s188
          %191 = dma.hbm_to_vmem [thread:$0]  %s186, 192, %s189, %s177
        $region32: #{tpu_custom_call.1} parent=27 // pred_fallthru
          _
      $region28: #{tpu_custom_call.1} parent=5 // pred_fallthru
        _
      %p192 = scmp.le.s32.totalorder 1, %s16
      %p193 = scmp.lt.s32.totalorder %s16, 3
      %p194 = pnand %p192, %p193
      %p195 = pneg %p194
      // Predicated region
      $region33: #{tpu_custom_call.1} parent=5 // pred_check
        _
      $region34: #{tpu_custom_call.1} parent=5 // pred_check_branch
        %197 = sbr.rel (%p194) target = $region36
      $region35: #{tpu_custom_call.1} parent=5 // pred_region
        %s198 = ssub.s32 %s16, 1
        %s199 = sand.u32 %s41, 1
        %s200 = scalar_lea.sflag [#allocation3], %s199
        %s201 = sand.u32 %s41, 1
        %s202 = smul.addr %s201, 12
        %s203 = scalar_lea.vmem [#allocation2], %s202
        // Predicated region
        $region37: #{tpu_custom_call.1} parent=35 // pred_check
          %p204 = pneg %p54
        $region38: #{tpu_custom_call.1} parent=35 // pred_check_branch
          %206 = sbr.rel (%p204) target = $region40
        $region39: #{tpu_custom_call.1} parent=35 // pred_region
          %207 = dma.done %s200, 192
        $region40: #{tpu_custom_call.1} parent=35 // pred_fallthru
          _
        %s208 = sand.u32 %s41, 1
        %s209 = scalar_lea.sflag [#allocation3], %s208
        %s210 = sand.u32 %s41, 1
        %s211 = smul.addr %s210, 12
        %s212 = scalar_lea.vmem [#allocation2], %s211
        %p213 = pneg %p54
        %p214 = pneg %p51
        %p215 = pneg %p75
        %p216 = pneg %p72
        %p217 = pneg %p96
        %p218 = pneg %p93
        %p219 = pneg %p117
        %p220 = pneg %p114
        %p221 = pneg %p145
        %p222 = pneg %p142
        %s223 = sand.u32 %s132, 1
        %s224 = scalar_lea.sflag [#allocation4], %s223
        %s225 = sand.u32 %s132, 1
        %s226 = smul.addr %s225, 16
        %s227 = scalar_lea.vmem [#allocation5], %s226
        %s228 = smul.u32 2, %s26
        %v229 = vld [vmem:[%s203] sm:$0xff]
        %v230 = vld [vmem:[%s203 + $0x8] sm:$0xf]
        %v231 = vlaneseq
        %v232 = vand.u32 %v231, 127
        %v233 = vadd.s32 %v232, 128
        %vm234 = vcmp.lt.s32.totalorder %v232, 0
        %v235 = vsub.s32 0, %v232
        %v236 = vsel %vm234, %v235, %v232
        %v237 = vshrl.u32 %v236, 4
        %v238 = vand.u32 %v236, 15
        %v239 = vsub.s32 0, %v238
        %v240 = vsel %vm234, %v239, %v238
        %vm241 = vcmp.lt.s32.totalorder %v233, 0
        %v242 = vsub.s32 0, %v233
        %v243 = vsel %vm241, %v242, %v233
        %v244 = vshrl.u32 %v243, 4
        %v245 = vand.u32 %v243, 15
        %v246 = vsub.s32 0, %v245
        %v247 = vsel %vm241, %v246, %v245
        %v248 = vadd.s32 %v240, 4294967295
        %v249 = vadd.s32 %v247, 4294967295
        %vm250 = vcmp.ge.s32.totalorder %v248, 0
        %vm251 = vcmp.ge.s32.totalorder %v249, 0
        %vm252 = vcmp.lt.s32.totalorder %v248, 16
        %vm253 = vcmp.lt.s32.totalorder %v249, 16
        %vm254 = vmand %vm250, %vm252
        %vm255 = vmand %vm251, %vm253
        %v256 = vadd.s32 %v240, 1
        %v257 = vadd.s32 %v247, 1
        %vm258 = vcmp.ge.s32.totalorder %v256, 0
        %vm259 = vcmp.ge.s32.totalorder %v257, 0
        %vm260 = vcmp.lt.s32.totalorder %v256, 16
        %vm261 = vcmp.lt.s32.totalorder %v257, 16
        %vm262 = vmand %vm258, %vm260
        %vm263 = vmand %vm259, %vm261
        %v264 = vsel %vm254, 1, 0
        %v265 = vsel %vm255, 1, 0
        %vm266 = vcmp.eq.s32.totalorder %v264, 1
        %vm267 = vcmp.eq.s32.totalorder %v265, 1
        %v269 = vcombine.high %v229, %v229
        %v271 = vsel %vm266, %v229, 0.0
        %v272 = vsel %vm267, %v269, 0.0
        %v273 = vsel %vm262, 1, 0
        %v274 = vsel %vm263, 1, 0
        %vm275 = vcmp.eq.s32.totalorder %v273, 1
        %vm276 = vcmp.eq.s32.totalorder %v274, 1
        %278 = vrot.lane.b32.xlu0 %v229, 126
        %v279 = vpop.permute.xlu0 %278
        %280 = vrot.lane.b32.xlu0 %v269, 126
        %v281 = vpop.permute.xlu0 %280
        %282 = vrot.lane.b32.xlu0 %v230, 126
        %v283 = vpop.permute.xlu0 %282
        %vm284 = vcmask 1031168
        %v285 = vsel %vm284, %v279, %v281
        %v286 = vsel %vm284, %v281, %v283
        %v289 = vsel %vm275, %v285, 0.0
        %v290 = vsel %vm276, %v286, 0.0
        %291 = vrot.lane.b32.xlu0 %v229, 112
        %v292 = vpop.permute.xlu0 %291
        %293 = vrot.lane.b32.xlu0 %v269, 112
        %v294 = vpop.permute.xlu0 %293
        %295 = vrot.lane.b32.xlu0 %v230, 112
        %v296 = vpop.permute.xlu0 %295
        %vm297 = vcmask 916480
        %v298 = vsel %vm297, %v292, %v294
        %v299 = vsel %vm297, %v294, %v296
        %v302 = vsel %vm266, %v298, 0.0
        %v303 = vsel %vm267, %v299, 0.0
        %304 = vrot.lane.b32.xlu0 %v229, 110
        %v305 = vpop.permute.xlu0 %304
        %306 = vrot.lane.b32.xlu0 %v269, 110
        %v307 = vpop.permute.xlu0 %306
        %308 = vrot.lane.b32.xlu0 %v230, 110
        %v309 = vpop.permute.xlu0 %308
        %vm310 = vcmask 900096
        %v311 = vsel %vm310, %v305, %v307
        %v312 = vsel %vm310, %v307, %v309
        %v315 = vsel %vm275, %v311, 0.0
        %v316 = vsel %vm276, %v312, 0.0
        %317 = vrot.lane.b32.xlu0 %v229, 96
        %v318 = vpop.permute.xlu0 %317
        %319 = vrot.lane.b32.xlu0 %v269, 96
        %v320 = vpop.permute.xlu0 %319
        %321 = vrot.lane.b32.xlu0 %v230, 96
        %v322 = vpop.permute.xlu0 %321
        %vm323 = vcmask 785408
        %v324 = vsel %vm323, %v318, %v320
        %v325 = vsel %vm323, %v320, %v322
        %v328 = vsel %vm266, %v324, 0.0
        %v329 = vsel %vm267, %v325, 0.0
        %330 = vrot.lane.b32.xlu0 %v229, 94
        %v331 = vpop.permute.xlu0 %330
        %332 = vrot.lane.b32.xlu0 %v269, 94
        %v333 = vpop.permute.xlu0 %332
        %334 = vrot.lane.b32.xlu0 %v230, 94
        %v335 = vpop.permute.xlu0 %334
        %vm336 = vcmask 769024
        %v337 = vsel %vm336, %v331, %v333
        %v338 = vsel %vm336, %v333, %v335
        %v341 = vsel %vm275, %v337, 0.0
        %v342 = vsel %vm276, %v338, 0.0
        %v343 = vcombine.low %v229, %v229
        %v344 = vcombine.low %v230, %v230
        %345 = vrot.lane.b32.xlu0 %v343, 127
        %v346 = vpop.permute.xlu0 %345
        %347 = vrot.lane.b32.xlu0 %v229, 127
        %v348 = vpop.permute.xlu0 %347
        %349 = vrot.lane.b32.xlu0 %v344, 127
        %v350 = vpop.permute.xlu0 %349
        %vm351 = vcmask 1039360
        %v352 = vsel %vm351, %v346, %v348
        %v353 = vsel %vm351, %v348, %v350
        %v358 = vrot.slane %v302, 4
        %v359 = vrot.slane %v303, 4
        %362 = vrot.lane.b32.xlu0 %v229, 111
        %v363 = vpop.permute.xlu0 %362
        %364 = vrot.lane.b32.xlu0 %v269, 111
        %v365 = vpop.permute.xlu0 %364
        %366 = vrot.lane.b32.xlu0 %v230, 111
        %v367 = vpop.permute.xlu0 %366
        %vm368 = vcmask 908288
        %v369 = vsel %vm368, %v363, %v365
        %v370 = vsel %vm368, %v365, %v367
        %v375 = vrot.slane %v315, 4
        %v376 = vrot.slane %v316, 4
        %379 = vrot.lane.b32.xlu0 %v343, 95
        %v380 = vpop.permute.xlu0 %379
        %381 = vrot.lane.b32.xlu0 %v229, 95
        %v382 = vpop.permute.xlu0 %381
        %383 = vrot.lane.b32.xlu0 %v344, 95
        %v384 = vpop.permute.xlu0 %383
        %vm385 = vcmask 777216
        %v386 = vsel %vm385, %v380, %v382
        %v387 = vsel %vm385, %v382, %v384
        %vm390 = vcmask 1043456
        %v391 = vsel %vm390, %v271, %v352
        %v392 = vsel %vm390, %v272, %v353
        %v393 = vsel %vm390, %v289, %v358
        %v394 = vsel %vm390, %v290, %v359
        %v395 = vsel %vm390, %v369, %v375
        %v396 = vsel %vm390, %v370, %v376
        %v397 = vsel %vm390, %v328, %v386
        %v398 = vsel %vm390, %v329, %v387
        %v399 = vld [vmem:[%s1] sm:$0xff]
        %vm400 = vcmask 293888
        %v402 = vsel %vm400, %v399, 0
        %v405 = vsel %vm390, %v341, 0
        %v408 = vsel %vm390, %v342, 0
        %410 = vmatprep.subr.mxu0 %v392
        %411 = vmatpush1.msra.mxu0 %v391
        %412 = vmatprep.subr.mxu0 %v394
        %413 = vmatpush1.msra.mxu0 %v393
        %414 = vmatprep.subr.mxu0 %v396
        %415 = vmatpush1.msra.mxu0 %v395
        %416 = vmatprep.subr.mxu0 %v398
        %417 = vmatpush1.msra.mxu0 %v397
        %418 = vmatprep.subr.mxu0 %v408
        %419 = vmatpush1.msra.mxu0 %v405
        %420 = vmatprep.subr.mxu0 0.0
        %421 = vmatpush1.msra.mxu0 0.0
        %422 = vmatprep.subr.mxu0 0.0
        %423 = vmatpush1.msra.mxu0 0.0
        %424 = vmatprep.subr.mxu0 0.0
        %425 = vmatpush1.msra.mxu0 0.0
        %426 = vmatprep.subr.mxu0 0.0
        %427 = vmatpush1.msra.mxu0 0.0
        %428 = vmatprep.subr.mxu0 0.0
        %429 = vmatpush1.msra.mxu0 0.0
        %430 = vmatprep.subr.mxu0 0.0
        %431 = vmatpush1.msra.mxu0 0.0
        %432 = vmatprep.subr.mxu0 0.0
        %433 = vmatpush1.msra.mxu0 0.0
        %434 = vmatprep.subr.mxu0 0.0
        %435 = vmatpush1.msra.mxu0 0.0
        %436 = vmatprep.subr.mxu0 0.0
        %437 = vmatpush1.msra.mxu0 0.0
        %438 = vmatprep.subr.mxu0 0.0
        %439 = vmatpush1.msra.mxu0 0.0
        %440 = vmatprep.subr.mxu0 0.0
        %441 = vmatpush1.msra.mxu0 0.0
        %442 = vmatprep.subr.mxu0 0.0
        %443 = vmatpush1.msra.mxu0 0.0
        %444 = vmatprep.subr.mxu0 0.0
        %445 = vmatpush1.msra.mxu0 0.0
        %446 = vmatprep.subr.mxu0 0.0
        %447 = vmatpush1.msra.mxu0 0.0
        %448 = vmatprep.subr.mxu0 0.0
        %449 = vmatpush1.msra.mxu0 0.0
        %450 = vmatprep.subr.mxu0 0.0
        %451 = vmatpush1.msra.mxu0 0.0
        %452 = vmatprep.subr.mxu0 0.0
        %453 = vmatpush1.msra.mxu0 0.0
        %454 = vmatprep.subr.mxu0 0.0
        %455 = vmatpush1.msra.mxu0 0.0
        %456 = vmatprep.subr.mxu0 0.0
        %457 = vmatpush1.msra.mxu0 0.0
        %458 = vmatprep.subr.mxu0 0.0
        %459 = vmatpush1.msra.mxu0 0.0
        %460 = vmatprep.subr.mxu0 0.0
        %461 = vmatpush1.msra.mxu0 0.0
        %462 = vmatprep.subr.mxu0 0.0
        %463 = vmatpush1.msra.mxu0 0.0
        %464 = vmatprep.subr.mxu0 0.0
        %465 = vmatpush1.msra.mxu0 0.0
        %466 = vmatprep.subr.mxu0 0.0
        %467 = vmatpush1.msra.mxu0 0.0
        %468 = vmatprep.subr.mxu0 0.0
        %469 = vmatpush1.msra.mxu0 0.0
        %470 = vmatprep.subr.mxu0 0.0
        %471 = vmatpush1.msra.mxu0 0.0
        %472 = vmatprep.subr.mxu0 0.0
        %473 = vmatpush1.msra.mxu0 0.0
        %474 = vmatprep.mubr.f32.mxu0 0.0
        %475 = vmatmul.mubr.f32.gmra.mrb[0].mxu0 %v402
        %v476 = vpop.f32.mrb[0].mxu0
        %v477 = vadd.f32 0.0, %v476
        %v478 = vpop.f32.mrb[0].mxu0
        %v479 = vadd.f32 0.0, %v478
        %480 = vdwg.mxu0
        %v481 = vld [vmem:[%s2] sm:$0xff]
        %483 = vset.pattern.permute.xlu0 0
        %484 = vperm.xlu0 %483, %v481
        %v485 = vpop.permute.xlu0 %484
        %v487 = vmul.f32 %v477, %v485
        %v488 = vmul.f32 %v479, %v485
        %v489 = vld [vmem:[%s3] sm:$0xff]
        %491 = vset.pattern.permute.xlu0 0
        %492 = vperm.xlu0 %491, %v489
        %v493 = vpop.permute.xlu0 %492
        %v495 = vadd.f32 %v487, %v493
        %v496 = vadd.f32 %v488, %v493
        %v497 = vmax.f32 %v495, 0.0
        %v498 = vmax.f32 %v496, 0.0
        %499 = vst [vmem:[%s227] sm:$0xff] %v497
        %500 = vst [vmem:[%s227 + $0x8] sm:$0xff] %v498
        %s501 = sand.u32 %s132, 1
        %s502 = scalar_lea.sflag [#allocation4], %s501
        %s503 = sand.u32 %s132, 1
        %s504 = smul.addr %s503, 16
        %s505 = scalar_lea.vmem [#allocation5], %s504
        // Predicated region
        $region41: #{tpu_custom_call.1} parent=35 // pred_check
          %p506 = pneg %p142
        $region42: #{tpu_custom_call.1} parent=35 // pred_check_branch
          %508 = sbr.rel (%p506) target = $region44
        $region43: #{tpu_custom_call.1} parent=35 // pred_region
          %s509 = smul.u32 2, %s26
          %s511 = ssub.s32 256, 256
          %512 = vsyncadd %s502, %s511
          %s513 = smul.addr %s25, 2
          %s514 = sadd.s32 %s509, %s513
          %s515 = smul.addr %s514, 128
          %s516 = scalar_lea.hbm %s4, %s515
          %s518 = sshll.u32 %s505, 4
          %s519 = int_to_ptr.vmem [resolvable:$true] %s518
          %521 = dma.vmem_to_hbm [thread:$0]  %s519, 256, %s516, %s502
        $region44: #{tpu_custom_call.1} parent=35 // pred_fallthru
          _
      $region36: #{tpu_custom_call.1} parent=5 // pred_fallthru
        _
      %p522 = scmp.le.s32.totalorder 2, %s16
      // Predicated region
      $region45: #{tpu_custom_call.1} parent=5 // pred_check
        %p523 = pneg %p522
      $region46: #{tpu_custom_call.1} parent=5 // pred_check_branch
        %525 = sbr.rel (%p523) target = $region48
      $region47: #{tpu_custom_call.1} parent=5 // pred_region
        %s526 = ssub.s32 %s16, 2
        // Predicated region
        $region49: #{tpu_custom_call.1} parent=47 // pred_check
          %p527 = pneg %p148
        $region50: #{tpu_custom_call.1} parent=47 // pred_check_branch
          %529 = sbr.rel (%p527) target = $region52
        $region51: #{tpu_custom_call.1} parent=47 // pred_region
          %s530 = sand.u32 %s133, 1
          %s531 = scalar_lea.sflag [#allocation4], %s530
          %s532 = sand.u32 %s133, 1
          %s533 = smul.addr %s532, 16
          %s534 = scalar_lea.vmem [#allocation5], %s533
          %535 = dma.done %s531, 256
        $region52: #{tpu_custom_call.1} parent=47 // pred_fallthru
          _
      $region48: #{tpu_custom_call.1} parent=5 // pred_fallthru
        _
    $region6: #{tpu_custom_call.1} parent=1 // loop_footer
      %s20 = sadd.s32 1, %s16
    $region7: #{tpu_custom_call.1} parent=1 // loop_footer_branch
      %15 = sbr.rel target = $region3
    $region8: #{tpu_custom_call.1} parent=1 // loop_exit
      _
    %536 = vsyncpa [#allocation3], 1
    %s537 = scalar_lea.sflag [#allocation3], 1
    %538 = vsyncpa %s537, 1
    %539 = vsyncpa [#allocation4], 1
    %s540 = scalar_lea.sflag [#allocation4], 1
    %541 = vsyncpa %s540, 1

</llo_original>
